<compile_context>
chip_gen: v7x
topology: tpu7x:2x2x1
jax: 0.10.0
libtpu: 0.0.40
codegen_flags: <defaults>
</compile_context>

<pallas_src>
import functools

import jax
import jax.numpy as jnp
from jax.experimental import pallas as pl
from jax.experimental.pallas import tpu as pltpu


def _round_up(x, m):
    return ((x + m - 1) // m) * m


def _sublane_pack(dtype):
    # f32 -> 8, bf16 -> 16 (sub-32-bit dtypes pack along sublanes).
    return 8 * (4 // jnp.dtype(dtype).itemsize)


def _pick_tile(dim_p, candidates=(512, 256, 128)):
    for c in candidates:
        if dim_p % c == 0:
            return c
    return 128


@functools.lru_cache(maxsize=None)
def _usable_vmem_bytes():
    """~3/4 of physical VMEM: ~96 MiB on v5e/v6e (128 MiB), ~48 MiB on v7x (64 MiB)."""
    try:
        cap = int(pltpu.get_tpu_info().vmem_capacity_bytes)
    except Exception:
        cap = 0
    if cap <= 0:
        cap = 64 * 1024 * 1024          # conservative fallback (v7x per-TC)
    return (cap * 3) // 4


@functools.lru_cache(maxsize=None)
def _buffered_supported(count):
    """Probe (eagerly, once) whether pipeline_mode=pl.Buffered(count) lowers here."""
    def _k(x_ref, o_ref):
        o_ref[...] = x_ref[...]
    try:
        spec = pl.BlockSpec((8, 128), lambda i: (0, 0),
                            pipeline_mode=pl.Buffered(count))
        x = jnp.zeros((8, 128), jnp.float32)
        out = pl.pallas_call(
            _k,
            out_shape=jax.ShapeDtypeStruct((8, 128), jnp.float32),
            grid=(1,),
            in_specs=[spec],
            out_specs=pl.BlockSpec((8, 128), lambda i: (0, 0)),
        )(x)
        jax.block_until_ready(out)
        return True
    except Exception:
        return False


def _resident_spec(block_shape):
    """Constant-index-map (VMEM-resident) input; single-buffered when supported."""
    idx_map = lambda i, _n=len(block_shape): (0,) * _n
    if _buffered_supported(1):
        return pl.BlockSpec(block_shape, idx_map, pipeline_mode=pl.Buffered(1))
    return pl.BlockSpec(block_shape, idx_map)


def _choose_batch_tile(M, pack, tm_cap):
    """Batch tile: as large as the cap allows, but split into >=2 grid steps when
    possible so both v7x TensorCores get work (harmless on single-TC chips)."""
    tm = min(tm_cap, _round_up(M, pack))
    Mp = _round_up(M, tm)
    if Mp // tm == 1:
        tm2 = _round_up((Mp + 1) // 2, pack)
        if tm2 < tm:
            tm = tm2
            Mp = _round_up(M, tm)
    return tm, Mp


# ---------------------------------------------------------------------------
# Fused whole-MLP kernel: weights resident in VMEM, grid over the batch axis.
# ---------------------------------------------------------------------------
def _fused_mlp_kernel(*refs, n_layers):
    x_ref = refs[0]
    o_ref = refs[-1]
    h = x_ref[...]                      # (tm, K0p), compute dtype (bf16)
    for li in range(n_layers):
        w_ref = refs[1 + 2 * li]        # (Kp, Np), compute dtype
        b_ref = refs[2 + 2 * li]        # (1, Np), f32
        acc = jnp.dot(h, w_ref[...], preferred_element_type=jnp.float32)
        acc = acc + b_ref[...]          # broadcast over rows, f32
        if li < n_layers - 1:
            h = jnp.maximum(acc, 0.0).astype(w_ref.dtype)
        else:
            o_ref[...] = acc.astype(o_ref.dtype)


def fused_mlp_forward(x, padded_layers, out_size, compute_dtype, tm, Mp):
    """Single pallas_call for the whole Linear/ReLU stack."""
    M, K = x.shape
    K0p = padded_layers[0][0].shape[0]
    Nlast_p = padded_layers[-1][0].shape[1]

    # Only the activation is padded per call (weights were pre-padded once);
    # allow_input_fusion lets this pad/cast fuse into the kernel's input DMA.
    xp = jnp.zeros((Mp, K0p), compute_dtype).at[:M, :K].set(
        x.astype(compute_dtype))

    in_specs = [pl.BlockSpec((tm, K0p), lambda i: (i, 0))]
    args = [xp]
    flops = 0
    bytes_accessed = xp.nbytes + Mp * Nlast_p * 4
    for (w_pad, b_pad) in padded_layers:
        Kp, Np = w_pad.shape
        in_specs.append(_resident_spec((Kp, Np)))     # resident weight
        in_specs.append(_resident_spec((1, Np)))      # resident bias
        args += [w_pad, b_pad]
        flops += 2 * Mp * Kp * Np
        bytes_accessed += w_pad.nbytes + b_pad.nbytes

    # Allow fusing only the producer of the activation (operand 0).
    fuse_mask = [True] + [False] * (2 * len(padded_layers))

    out = pl.pallas_call(
        functools.partial(_fused_mlp_kernel, n_layers=len(padded_layers)),
        out_shape=jax.ShapeDtypeStruct((Mp, Nlast_p), jnp.float32),
        grid_spec=pltpu.PrefetchScalarGridSpec(
            num_scalar_prefetch=0,
            grid=(Mp // tm,),
            in_specs=in_specs,
            out_specs=pl.BlockSpec((tm, Nlast_p), lambda i: (i, 0)),
        ),
        compiler_params=pltpu.CompilerParams(
            dimension_semantics=("parallel",),
            vmem_limit_bytes=_usable_vmem_bytes(),
            allow_input_fusion=fuse_mask),
        cost_estimate=pl.CostEstimate(
            flops=flops, transcendentals=0, bytes_accessed=bytes_accessed),
    )(*args)

    return out[:M, :out_size]


# ---------------------------------------------------------------------------
# Tiled single-layer kernel (fallback for layers too big to keep resident).
# ---------------------------------------------------------------------------
def _linear_tiled_kernel(x_ref, w_ref, b_ref, o_ref, acc_ref, *, apply_relu):
    k = pl.program_id(2)

    @pl.when(k == 0)
    def _():
        acc_ref[...] = jnp.zeros_like(acc_ref)

    acc_ref[...] += jnp.dot(x_ref[...], w_ref[...],
                            preferred_element_type=jnp.float32)

    @pl.when(k == pl.num_programs(2) - 1)
    def _():
        acc = acc_ref[...] + b_ref[...]
        if apply_relu:
            acc = jnp.maximum(acc, 0.0)
        o_ref[...] = acc.astype(o_ref.dtype)     # lane-dense (tn % 128 == 0)


def linear_tiled(xp, wp, bp, *, apply_relu, out_dtype, tm, fuse_input=False):
    """One Linear(+ReLU) layer on pre-padded operands with a (tm, tn, tk) grid."""
    Mp, Kp = xp.shape
    _, Np = wp.shape
    tn = _pick_tile(Np)
    tk = _pick_tile(Kp)
    grid = (Mp // tm, Np // tn, Kp // tk)

    # Deeper buffering on the streamed weight hides DMA jitter on long K loops
    # (mostly matters on v6e where the weight stream is the critical resource).
    if grid[2] > 2 and _buffered_supported(3):
        w_spec = pl.BlockSpec((tk, tn), lambda i, j, k: (k, j),
                              pipeline_mode=pl.Buffered(3))
    else:
        w_spec = pl.BlockSpec((tk, tn), lambda i, j, k: (k, j))

    flops = 2 * Mp * Kp * Np
    bytes_accessed = (xp.nbytes + wp.nbytes + bp.nbytes
                      + Mp * Np * jnp.dtype(out_dtype).itemsize)

    return pl.pallas_call(
        functools.partial(_linear_tiled_kernel, apply_relu=apply_relu),
        out_shape=jax.ShapeDtypeStruct((Mp, Np), out_dtype),
        grid_spec=pltpu.PrefetchScalarGridSpec(
            num_scalar_prefetch=0,
            grid=grid,
            in_specs=[
                pl.BlockSpec((tm, tk), lambda i, j, k: (i, k)),
                w_spec,
                pl.BlockSpec((1, tn), lambda i, j, k: (0, j)),
            ],
            out_specs=pl.BlockSpec((tm, tn), lambda i, j, k: (i, j)),
            scratch_shapes=[pltpu.VMEM((tm, tn), jnp.float32)],
        ),
        compiler_params=pltpu.CompilerParams(
            dimension_semantics=("parallel", "parallel", "arbitrary"),
            vmem_limit_bytes=_usable_vmem_bytes(),
            allow_input_fusion=[bool(fuse_input), False, False]),
        cost_estimate=pl.CostEstimate(
            flops=flops, transcendentals=0, bytes_accessed=bytes_accessed),
    )(xp, wp, bp)


# ---------------------------------------------------------------------------
# Model
# ---------------------------------------------------------------------------
class DenseNN:
    """JAX/Pallas port of the PyTorch DenseNN (Linear/ReLU stack)."""

    def __init__(self, in_size, hidden_sizes, out_size, key,
                 compute_dtype=jnp.bfloat16):
        self.compute_dtype = compute_dtype
        self.out_size = out_size

        sizes = [in_size] + list(hidden_sizes) + [out_size]
        self.params = []        # raw f32 (for reference / export)
        self.padded = []        # pre-padded, pre-cast compute-dtype copies
        for li in range(len(sizes) - 1):
            fan_in, fan_out = sizes[li], sizes[li + 1]
            key, kw, kb = jax.random.split(key, 3)
            bound = 1.0 / jnp.sqrt(jnp.float32(fan_in))
            # PyTorch nn.Linear default init: U(-1/sqrt(fan_in), 1/sqrt(fan_in)).
            # Stored as [in, out] (transposed from torch's [out, in]) so the
            # kernel hot path is a plain x @ W + b on the MXU.
            w = jax.random.uniform(kw, (fan_in, fan_out), jnp.float32,
                                   minval=-bound, maxval=bound)
            b = jax.random.uniform(kb, (fan_out,), jnp.float32,
                                   minval=-bound, maxval=bound)
            self.params.append((w, b))

            # Pad ONCE to lane-aligned shapes; cast weights to compute dtype,
            # keep biases f32 (added to the f32 accumulator).
            Kp, Np = _round_up(fan_in, 128), _round_up(fan_out, 128)
            w_pad = jnp.zeros((Kp, Np), compute_dtype).at[:fan_in, :fan_out].set(
                w.astype(compute_dtype))
            b_pad = jnp.zeros((1, Np), jnp.float32).at[0, :fan_out].set(b)
            self.padded.append((w_pad, b_pad))

        self.n_layers = len(self.params)

        self._weight_bytes = sum(w.nbytes + b.nbytes for (w, b) in self.padded)
        self._max_np = max(w.shape[1] for (w, _) in self.padded)
        self._k0p = self.padded[0][0].shape[0]
        self._nlast_p = self.padded[-1][0].shape[1]

        # Cap tm so the live f32 accumulator of wide hidden layers doesn't
        # spill the vreg file (review: tm <= 128 when max Np >= 1024).
        self._fused_tm_cap = 128 if self._max_np >= 1024 else 256
        self._tiled_tm_cap = 1024

        # Warm the eager probes OUTSIDE any jit trace (lru_cached afterwards).
        _buffered_supported(1)
        _buffered_supported(3)
        _usable_vmem_bytes()

    # Full VMEM accounting for the fused path (not just weight bytes).
    def _fused_vmem_need(self, tm):
        itm = jnp.dtype(self.compute_dtype).itemsize
        w_mult = 1 if _buffered_supported(1) else 2   # single-buffered residents
        return (w_mult * self._weight_bytes
                + 2 * tm * self._k0p * itm            # double-buffered x block
                + 2 * tm * self._nlast_p * 4          # double-buffered f32 out block
                + tm * self._max_np * (4 + itm))      # live f32 acc + next activation

    def __call__(self, x):
        M, _ = x.shape
        pack = _sublane_pack(self.compute_dtype)
        tm, Mp = _choose_batch_tile(M, pack, self._fused_tm_cap)
        if self._fused_vmem_need(tm) <= int(0.9 * _usable_vmem_bytes()):
            return fused_mlp_forward(x, self.padded, self.out_size,
                                     self.compute_dtype, tm, Mp)
        # TODO(synk): hybrid path (small layers resident + emit_pipeline for the
        # single oversized weight) instead of full per-layer HBM round trips.
        return self._forward_tiled(x)

    def _forward_tiled(self, x):
        """Per-layer tiled kernels; activations stay padded between layers."""
        M, K = x.shape
        pack = _sublane_pack(self.compute_dtype)
        # Weight HBM traffic scales with Mp/tm, so use the biggest batch tile
        # that fits (up to 1024) — cuts weight re-streaming on v6e/v7x.
        tm, Mp = _choose_batch_tile(M, pack, self._tiled_tm_cap)

        hp = jnp.zeros((Mp, self._k0p), self.compute_dtype).at[:M, :K].set(
            x.astype(self.compute_dtype))

        for li, (w_pad, b_pad) in enumerate(self.padded):
            last = li == self.n_layers - 1
            out_dtype = jnp.float32 if last else self.compute_dtype
            hp = linear_tiled(hp, w_pad, b_pad, apply_relu=not last,
                              out_dtype=out_dtype, tm=tm,
                              fuse_input=(li == 0))
        return hp[:M, :self.out_size]


def _reference_forward(model, x):
    """Pure-jnp reference with the same bf16-compute / f32-accumulate math."""
    h = x
    for li, (w, b) in enumerate(model.params):
        hc = h.astype(model.compute_dtype)
        wc = w.astype(model.compute_dtype)
        acc = jnp.dot(hc, wc, preferred_element_type=jnp.float32) + b
        if li != model.n_layers - 1:
            acc = jnp.maximum(acc, 0.0)
        h = acc
    return h


if __name__ == "__main__":
    key = jax.random.PRNGKey(0)
    key, k_in = jax.random.split(key)

    batch = 2
    in_size = 16
    hidden_sizes = [32, 32]
    out_size = 4

    model = DenseNN(in_size, hidden_sizes, out_size, key)
    x = jax.random.normal(k_in, (batch, in_size), jnp.float32)

    # Fused whole-MLP path (the default for these sizes), jitted so the
    # activation pad/cast can fuse into the kernel's input DMA.
    fused_fn = jax.jit(model.__call__)
    y = jax.block_until_ready(fused_fn(x))
    y_ref = _reference_forward(model, x)
    assert y.shape == (batch, out_size)
    assert jnp.allclose(y, y_ref, atol=5e-3, rtol=5e-3), (
        f"fused mismatch: {jnp.max(jnp.abs(y - y_ref))}")

    # Also exercise the tiled fallback path and check it agrees.
    tiled_fn = jax.jit(model._forward_tiled)
    y_tiled = jax.block_until_ready(tiled_fn(x))
    assert y_tiled.shape == (batch, out_size)
    assert jnp.allclose(y_tiled, y_ref, atol=5e-3, rtol=5e-3), (
        f"tiled mismatch: {jnp.max(jnp.abs(y_tiled - y_ref))}")

    print("KERNEL_OK")
</pallas_src>

<mosaic_0001>
module attributes {stable_mosaic.version = 11 : i64} {
  func.func @_k(%arg0: i32, %arg1: memref<8x128xf32, #tpu.memory_space<vmem>>, %arg2: memref<8x128xf32, #tpu.memory_space<vmem>>) attributes {dimension_semantics = [#tpu.dimension_semantics<arbitrary>], iteration_bounds = array<i64: 1>, scalar_prefetch = 0 : i64, scratch_operands = 0 : i64, tpu.core_type = #tpu.core_type<tc>, window_params = [{pipeline_mode = #tpu.pipeline_mode<synchronous>, transform_indices = @transform_0, window_bounds = array<i64: 8, 128>}, {pipeline_mode = #tpu.pipeline_mode<synchronous>, transform_indices = @transform_1, window_bounds = array<i64: 8, 128>}]} {
    %c0 = arith.constant 0 : index
    %c0_0 = arith.constant 0 : index
    %0 = vector.load %arg1[%c0, %c0_0] : memref<8x128xf32, #tpu.memory_space<vmem>>, vector<8x128xf32>
    %c0_1 = arith.constant 0 : index
    %c0_2 = arith.constant 0 : index
    %1 = vector.load %arg2[%c0_1, %c0_2] : memref<8x128xf32, #tpu.memory_space<vmem>>, vector<8x128xf32>
    tpu.vector_store %arg2[%c0_1, %c0_2], %0 {strides = array<i32>} : memref<8x128xf32, #tpu.memory_space<vmem>>, vector<8x128xf32>,
    return
  }
  func.func @transform_0(%arg0: i32) -> (i32, i32) {
    %c0_i32 = arith.constant 0 : i32
    %c0_i32_0 = arith.constant 0 : i32
    %c0_i32_1 = arith.constant 0 : i32
    return %c0_i32, %c0_i32_0 : i32, i32
  }
  func.func @transform_1(%arg0: i32) -> (i32, i32) {
    %c0_i32 = arith.constant 0 : i32
    %c0_i32_0 = arith.constant 0 : i32
    %c0_i32_1 = arith.constant 0 : i32
    return %c0_i32, %c0_i32_0 : i32, i32
  }
}

module attributes {stable_mosaic.version = 11 : i64} {
  func.func @_k(%arg0: i32, %arg1: memref<8x128xf32, #tpu.memory_space<vmem>>, %arg2: memref<8x128xf32, #tpu.memory_space<vmem>>) attributes {dimension_semantics = [#tpu.dimension_semantics<arbitrary>], iteration_bounds = array<i64: 1>, scalar_prefetch = 0 : i64, scratch_operands = 0 : i64, tpu.core_type = #tpu.core_type<tc>, window_params = [{pipeline_mode = #tpu.pipeline_mode<synchronous>, transform_indices = @transform_0, window_bounds = array<i64: 8, 128>}, {pipeline_mode = #tpu.pipeline_mode<synchronous>, transform_indices = @transform_1, window_bounds = array<i64: 8, 128>}]} {
    %c0 = arith.constant 0 : index
    %c0_0 = arith.constant 0 : index
    %0 = vector.load %arg1[%c0, %c0_0] : memref<8x128xf32, #tpu.memory_space<vmem>>, vector<8x128xf32>
    %c0_1 = arith.constant 0 : index
    %c0_2 = arith.constant 0 : index
    %1 = vector.load %arg2[%c0_1, %c0_2] : memref<8x128xf32, #tpu.memory_space<vmem>>, vector<8x128xf32>
    tpu.vector_store %arg2[%c0_1, %c0_2], %0 {strides = array<i32>} : memref<8x128xf32, #tpu.memory_space<vmem>>, vector<8x128xf32>,
    return
  }
  func.func @transform_0(%arg0: i32) -> (i32, i32) {
    %c0_i32 = arith.constant 0 : i32
    %c0_i32_0 = arith.constant 0 : i32
    %c0_i32_1 = arith.constant 0 : i32
    return %c0_i32, %c0_i32_0 : i32, i32
  }
  func.func @transform_1(%arg0: i32) -> (i32, i32) {
    %c0_i32 = arith.constant 0 : i32
    %c0_i32_0 = arith.constant 0 : i32
    %c0_i32_1 = arith.constant 0 : i32
    return %c0_i32, %c0_i32_0 : i32, i32
  }
}

module attributes {stable_mosaic.version = 11 : i64} {
  func.func @_fused_mlp_kernel(%arg0: i32, %arg1: memref<16x128xbf16, #tpu.memory_space<vmem>>, %arg2: memref<128x128xbf16, #tpu.memory_space<vmem>>, %arg3: memref<1x128xf32, #tpu.memory_space<vmem>>, %arg4: memref<128x128xbf16, #tpu.memory_space<vmem>>, %arg5: memref<1x128xf32, #tpu.memory_space<vmem>>, %arg6: memref<128x128xbf16, #tpu.memory_space<vmem>>, %arg7: memref<1x128xf32, #tpu.memory_space<vmem>>, %arg8: memref<16x128xf32, #tpu.memory_space<vmem>>) attributes {dimension_semantics = [#tpu.dimension_semantics<parallel>], iteration_bounds = array<i64: 1>, scalar_prefetch = 0 : i64, scratch_operands = 0 : i64, tpu.core_type = #tpu.core_type<tc>, window_params = [{transform_indices = @transform_0, window_bounds = array<i64: 16, 128>}, {pipeline_mode = #tpu.pipeline_mode<synchronous>, transform_indices = @transform_1, window_bounds = array<i64: 128, 128>}, {pipeline_mode = #tpu.pipeline_mode<synchronous>, transform_indices = @transform_2, window_bounds = array<i64: 1, 128>}, {pipeline_mode = #tpu.pipeline_mode<synchronous>, transform_indices = @transform_3, window_bounds = array<i64: 128, 128>}, {pipeline_mode = #tpu.pipeline_mode<synchronous>, transform_indices = @transform_4, window_bounds = array<i64: 1, 128>}, {pipeline_mode = #tpu.pipeline_mode<synchronous>, transform_indices = @transform_5, window_bounds = array<i64: 128, 128>}, {pipeline_mode = #tpu.pipeline_mode<synchronous>, transform_indices = @transform_6, window_bounds = array<i64: 1, 128>}, {transform_indices = @transform_7, window_bounds = array<i64: 16, 128>}]} {
    %c0 = arith.constant 0 : index
    %c0_0 = arith.constant 0 : index
    %0 = vector.load %arg1[%c0, %c0_0] : memref<16x128xbf16, #tpu.memory_space<vmem>>, vector<16x128xbf16>
    %c0_1 = arith.constant 0 : index
    %c0_2 = arith.constant 0 : index
    %1 = vector.load %arg2[%c0_1, %c0_2] : memref<128x128xbf16, #tpu.memory_space<vmem>>, vector<128x128xbf16>
    %cst = arith.constant dense<0.000000e+00> : vector<16x128xf32>
    %2 = tpu.matmul %0, %1, %cst {dimension_numbers = #tpu.dot_dimension_numbers<[1], [0], [0], [1], [0, 0, 1, 1], [], []>} : vector<16x128xbf16>, vector<128x128xbf16>, vector<16x128xf32> -> vector<16x128xf32>
    %c0_3 = arith.constant 0 : index
    %c0_4 = arith.constant 0 : index
    %3 = vector.load %arg3[%c0_3, %c0_4] : memref<1x128xf32, #tpu.memory_space<vmem>>, vector<1x128xf32>
    %4 = vector.broadcast %3 : vector<1x128xf32> to vector<16x128xf32>
    %5 = arith.addf %2, %4 : vector<16x128xf32>
    %cst_5 = arith.constant 0.000000e+00 : f32
    %6 = vector.broadcast %cst_5 : f32 to vector<16x128xf32>
    %7 = arith.maximumf %5, %6 : vector<16x128xf32>
    %8 = arith.truncf %7 : vector<16x128xf32> to vector<16x128xbf16>
    %c0_6 = arith.constant 0 : index
    %c0_7 = arith.constant 0 : index
    %9 = vector.load %arg4[%c0_6, %c0_7] : memref<128x128xbf16, #tpu.memory_space<vmem>>, vector<128x128xbf16>
    %cst_8 = arith.constant dense<0.000000e+00> : vector<16x128xf32>
    %10 = tpu.matmul %8, %9, %cst_8 {dimension_numbers = #tpu.dot_dimension_numbers<[1], [0], [0], [1], [0, 0, 1, 1], [], []>} : vector<16x128xbf16>, vector<128x128xbf16>, vector<16x128xf32> -> vector<16x128xf32>
    %c0_9 = arith.constant 0 : index
    %c0_10 = arith.constant 0 : index
    %11 = vector.load %arg5[%c0_9, %c0_10] : memref<1x128xf32, #tpu.memory_space<vmem>>, vector<1x128xf32>
    %12 = vector.broadcast %11 : vector<1x128xf32> to vector<16x128xf32>
    %13 = arith.addf %10, %12 : vector<16x128xf32>
    %cst_11 = arith.constant 0.000000e+00 : f32
    %14 = vector.broadcast %cst_11 : f32 to vector<16x128xf32>
    %15 = arith.maximumf %13, %14 : vector<16x128xf32>
    %16 = arith.truncf %15 : vector<16x128xf32> to vector<16x128xbf16>
    %c0_12 = arith.constant 0 : index
    %c0_13 = arith.constant 0 : index
    %17 = vector.load %arg6[%c0_12, %c0_13] : memref<128x128xbf16, #tpu.memory_space<vmem>>, vector<128x128xbf16>
    %cst_14 = arith.constant dense<0.000000e+00> : vector<16x128xf32>
    %18 = tpu.matmul %16, %17, %cst_14 {dimension_numbers = #tpu.dot_dimension_numbers<[1], [0], [0], [1], [0, 0, 1, 1], [], []>} : vector<16x128xbf16>, vector<128x128xbf16>, vector<16x128xf32> -> vector<16x128xf32>
    %c0_15 = arith.constant 0 : index
    %c0_16 = arith.constant 0 : index
    %19 = vector.load %arg7[%c0_15, %c0_16] : memref<1x128xf32, #tpu.memory_space<vmem>>, vector<1x128xf32>
    %20 = vector.broadcast %19 : vector<1x128xf32> to vector<16x128xf32>
    %21 = arith.addf %18, %20 : vector<16x128xf32>
    %c0_17 = arith.constant 0 : index
    %c0_18 = arith.constant 0 : index
    %22 = vector.load %arg8[%c0_17, %c0_18] : memref<16x128xf32, #tpu.memory_space<vmem>>, vector<16x128xf32>
    tpu.vector_store %arg8[%c0_17, %c0_18], %21 {strides = array<i32>} : memref<16x128xf32, #tpu.memory_space<vmem>>, vector<16x128xf32>,
    return
  }
  func.func @transform_0(%arg0: i32) -> (i32, i32) {
    %c0_i32 = arith.constant 0 : i32
    %c0_i32_0 = arith.constant 0 : i32
    return %arg0, %c0_i32 : i32, i32
  }
  func.func @transform_1(%arg0: i32) -> (i32, i32) {
    %c0_i32 = arith.constant 0 : i32
    %c0_i32_0 = arith.constant 0 : i32
    %c0_i32_1 = arith.constant 0 : i32
    return %c0_i32, %c0_i32_0 : i32, i32
  }
  func.func @transform_2(%arg0: i32) -> (i32, i32) {
    %c0_i32 = arith.constant 0 : i32
    %c0_i32_0 = arith.constant 0 : i32
    %c0_i32_1 = arith.constant 0 : i32
    return %c0_i32, %c0_i32_0 : i32, i32
  }
  func.func @transform_3(%arg0: i32) -> (i32, i32) {
    %c0_i32 = arith.constant 0 : i32
    %c0_i32_0 = arith.constant 0 : i32
    %c0_i32_1 = arith.constant 0 : i32
    return %c0_i32, %c0_i32_0 : i32, i32
  }
  func.func @transform_4(%arg0: i32) -> (i32, i32) {
    %c0_i32 = arith.constant 0 : i32
    %c0_i32_0 = arith.constant 0 : i32
    %c0_i32_1 = arith.constant 0 : i32
    return %c0_i32, %c0_i32_0 : i32, i32
  }
  func.func @transform_5(%arg0: i32) -> (i32, i32) {
    %c0_i32 = arith.constant 0 : i32
    %c0_i32_0 = arith.constant 0 : i32
    %c0_i32_1 = arith.constant 0 : i32
    return %c0_i32, %c0_i32_0 : i32, i32
  }
  func.func @transform_6(%arg0: i32) -> (i32, i32) {
    %c0_i32 = arith.constant 0 : i32
    %c0_i32_0 = arith.constant 0 : i32
    %c0_i32_1 = arith.constant 0 : i32
    return %c0_i32, %c0_i32_0 : i32, i32
  }
  func.func @transform_7(%arg0: i32) -> (i32, i32) {
    %c0_i32 = arith.constant 0 : i32
    %c0_i32_0 = arith.constant 0 : i32
    return %arg0, %c0_i32 : i32, i32
  }
}

</mosaic_0001>

<llo_original>
// kernel: tpu_custom_call.1
$region0: #{tpu_custom_call.1}
  #allocation0 [shape = 'u32[]', space=smem, size = 0x4, offset = 0x4, fixed_abs, tag = 'smem constant byte address 0x4 - core index']
  #allocation1 [shape = 'u32[144,128]{1,0:T(1,128)}', space=vmem, size = 0x12000, scoped, tag = 'internal scratch']
  %s0 = inlined_call_operand.hbm [shape: f32[8,128], index: 0, kind: input, shape index: {}]
  %s1 = inlined_call_operand.hbm [shape: f32[8,128], index: 1, kind: output, shape index: {}]
  %s2 = sld [smem:[#allocation0]]
  $region18: #{tpu_custom_call.1} parent=0
    _
  %s4 = ssub.s32 1, %s2
  %s5 = scalar_select 0, %s4, %s2
  $region1: #{tpu_custom_call.1} parent=0
    #allocation2 [shape = 'u8[4096]{0}', space=vmem, size = 0x1000, scoped, tag = 'input window, operand 0, single buffered']
    #allocation3 [shape = 's32[1]{0}', space=sflag, size = 0x4, scoped, tag = 'scoped memory for tpu_custom_call.1']
    #allocation4 [shape = 's32[1]{0}', space=sflag, size = 0x4, scoped, tag = 'scoped memory for tpu_custom_call.1']
    #allocation5 [shape = 'u8[4096]{0}', space=vmem, size = 0x1000, scoped, tag = 'output window, operand 0, single buffered']
    %6 = vsyncpa [#allocation3], 0
    %7 = vsyncpa [#allocation4], 0
    // Predicated region
    $region2: #{tpu_custom_call.1} parent=1 // pred_check
      _
    $region3: #{tpu_custom_call.1} parent=1 // pred_check_branch
      %9 = sbr.rel (0) target = $region5
    $region4: #{tpu_custom_call.1} parent=1 // pred_region
      %s11 = ssub.s32 128, 128
      %12 = vsyncadd [#allocation3], %s11
      %s14 = sshll.u32 [#allocation2], 4
      %s15 = int_to_ptr.vmem [resolvable:$true] %s14
      %17 = dma.hbm_to_vmem [thread:$0]  %s0, 128, %s15, [#allocation3]
    $region5: #{tpu_custom_call.1} parent=1 // pred_fallthru
      _
    // Predicated region
    $region6: #{tpu_custom_call.1} parent=1 // pred_check
      _
    $region7: #{tpu_custom_call.1} parent=1 // pred_check_branch
      %19 = sbr.rel (0) target = $region9
    $region8: #{tpu_custom_call.1} parent=1 // pred_region
      %20 = dma.done [#allocation3], 128
    $region9: #{tpu_custom_call.1} parent=1 // pred_fallthru
      _
    %v21 = vld [vmem:[#allocation2] sm:$0xff]
    %22 = vst [vmem:[#allocation5] sm:$0xff] %v21
    // Predicated region
    $region10: #{tpu_custom_call.1} parent=1 // pred_check
      _
    $region11: #{tpu_custom_call.1} parent=1 // pred_check_branch
      %24 = sbr.rel (0) target = $region13
    $region12: #{tpu_custom_call.1} parent=1 // pred_region
      %s26 = ssub.s32 128, 128
      %27 = vsyncadd [#allocation4], %s26
      %s29 = sshll.u32 [#allocation5], 4
      %s30 = int_to_ptr.vmem [resolvable:$true] %s29
      %32 = dma.vmem_to_hbm [thread:$0]  %s30, 128, %s1, [#allocation4]
    $region13: #{tpu_custom_call.1} parent=1 // pred_fallthru
      _
    // Predicated region
    $region14: #{tpu_custom_call.1} parent=1 // pred_check
      _
    $region15: #{tpu_custom_call.1} parent=1 // pred_check_branch
      %34 = sbr.rel (0) target = $region17
    $region16: #{tpu_custom_call.1} parent=1 // pred_region
      %35 = dma.done [#allocation4], 128
    $region17: #{tpu_custom_call.1} parent=1 // pred_fallthru
      _
    %36 = vsyncpa [#allocation3], 1
    %37 = vsyncpa [#allocation4], 1

// kernel: tpu_custom_call.1
$region0: #{tpu_custom_call.1}
  #allocation0 [shape = 'u32[]', space=smem, size = 0x4, offset = 0x4, fixed_abs, tag = 'smem constant byte address 0x4 - core index']
  #allocation1 [shape = 'u32[144,128]{1,0:T(1,128)}', space=vmem, size = 0x12000, scoped, tag = 'internal scratch']
  %s0 = inlined_call_operand.hbm [shape: f32[8,128], index: 0, kind: input, shape index: {}]
  %s1 = inlined_call_operand.hbm [shape: f32[8,128], index: 1, kind: output, shape index: {}]
  %s2 = sld [smem:[#allocation0]]
  $region18: #{tpu_custom_call.1} parent=0
    _
  %s4 = ssub.s32 1, %s2
  %s5 = scalar_select 0, %s4, %s2
  $region1: #{tpu_custom_call.1} parent=0
    #allocation2 [shape = 'u8[4096]{0}', space=vmem, size = 0x1000, scoped, tag = 'input window, operand 0, single buffered']
    #allocation3 [shape = 's32[1]{0}', space=sflag, size = 0x4, scoped, tag = 'scoped memory for tpu_custom_call.1']
    #allocation4 [shape = 's32[1]{0}', space=sflag, size = 0x4, scoped, tag = 'scoped memory for tpu_custom_call.1']
    #allocation5 [shape = 'u8[4096]{0}', space=vmem, size = 0x1000, scoped, tag = 'output window, operand 0, single buffered']
    %6 = vsyncpa [#allocation3], 0
    %7 = vsyncpa [#allocation4], 0
    // Predicated region
    $region2: #{tpu_custom_call.1} parent=1 // pred_check
      _
    $region3: #{tpu_custom_call.1} parent=1 // pred_check_branch
      %9 = sbr.rel (0) target = $region5
    $region4: #{tpu_custom_call.1} parent=1 // pred_region
      %s11 = ssub.s32 128, 128
      %12 = vsyncadd [#allocation3], %s11
      %s14 = sshll.u32 [#allocation2], 4
      %s15 = int_to_ptr.vmem [resolvable:$true] %s14
      %17 = dma.hbm_to_vmem [thread:$0]  %s0, 128, %s15, [#allocation3]
    $region5: #{tpu_custom_call.1} parent=1 // pred_fallthru
      _
    // Predicated region
    $region6: #{tpu_custom_call.1} parent=1 // pred_check
      _
    $region7: #{tpu_custom_call.1} parent=1 // pred_check_branch
      %19 = sbr.rel (0) target = $region9
    $region8: #{tpu_custom_call.1} parent=1 // pred_region
      %20 = dma.done [#allocation3], 128
    $region9: #{tpu_custom_call.1} parent=1 // pred_fallthru
      _
    %v21 = vld [vmem:[#allocation2] sm:$0xff]
    %22 = vst [vmem:[#allocation5] sm:$0xff] %v21
    // Predicated region
    $region10: #{tpu_custom_call.1} parent=1 // pred_check
      _
    $region11: #{tpu_custom_call.1} parent=1 // pred_check_branch
      %24 = sbr.rel (0) target = $region13
    $region12: #{tpu_custom_call.1} parent=1 // pred_region
      %s26 = ssub.s32 128, 128
      %27 = vsyncadd [#allocation4], %s26
      %s29 = sshll.u32 [#allocation5], 4
      %s30 = int_to_ptr.vmem [resolvable:$true] %s29
      %32 = dma.vmem_to_hbm [thread:$0]  %s30, 128, %s1, [#allocation4]
    $region13: #{tpu_custom_call.1} parent=1 // pred_fallthru
      _
    // Predicated region
    $region14: #{tpu_custom_call.1} parent=1 // pred_check
      _
    $region15: #{tpu_custom_call.1} parent=1 // pred_check_branch
      %34 = sbr.rel (0) target = $region17
    $region16: #{tpu_custom_call.1} parent=1 // pred_region
      %35 = dma.done [#allocation4], 128
    $region17: #{tpu_custom_call.1} parent=1 // pred_fallthru
      _
    %36 = vsyncpa [#allocation3], 1
    %37 = vsyncpa [#allocation4], 1

// kernel: a_call__.2
$region0: #{a_call__.2}
  #allocation0 [shape = 'u32[]', space=smem, size = 0x4, offset = 0x4, fixed_abs, tag = 'smem constant byte address 0x4 - core index']
  #allocation1 [shape = 'u32[144,128]{1,0:T(1,128)}', space=vmem, size = 0x12000, scoped, tag = 'internal scratch']
  #allocation2 [shape = 'u32[2048]{0}', space=vmem, size = 0x2000, scoped, tag = 'scoped memory for a_call__.2']
  #allocation3 [shape = 'u32[2048]{0}', space=vmem, size = 0x2000, scoped, tag = 'scoped memory for a_call__.2']
  #allocation4 [shape = 'u32[2048]{0}', space=vmem, size = 0x2000, scoped, tag = 'scoped memory for a_call__.2']
  #allocation5 [shape = 'u32[2048]{0}', space=vmem, size = 0x2000, scoped, tag = 'scoped memory for a_call__.2']
  #allocation6 [shape = 'u32[2048]{0}', space=vmem, size = 0x2000, scoped, tag = 'scoped memory for a_call__.2']
  %s0 = inlined_call_operand.hbm [shape: bf16[128,128], index: 0, kind: input, shape index: {}]
  %s1 = inlined_call_operand.vmem [shape: f32[1,128], index: 1, kind: input, shape index: {}]
  %s2 = inlined_call_operand.hbm [shape: bf16[128,128], index: 2, kind: input, shape index: {}]
  %s3 = inlined_call_operand.vmem [shape: f32[1,128], index: 3, kind: input, shape index: {}]
  %s4 = inlined_call_operand.hbm [shape: bf16[128,128], index: 4, kind: input, shape index: {}]
  %s5 = inlined_call_operand.vmem [shape: f32[1,128], index: 5, kind: input, shape index: {}]
  %s6 = inlined_call_operand.vmem [shape: bf16[2,16], index: 6, kind: input, shape index: {}]
  %s7 = inlined_call_operand.<no memory space> [shape: bf16[], index: 7, kind: input, shape index: {}]
  %s8 = inlined_call_operand.vmem [shape: f32[16,128], index: 8, kind: output, shape index: {}]
  %s9 = sld [smem:[#allocation0]]
  $region50: #{a_call__.2} parent=0
    _
  %s11 = ssub.s32 1, %s9
  %s12 = scalar_select 0, %s11, %s9
  %v13 = vstv %s7
  %v14 = vunpack.i.l.bf16 %v13
  %v16 = vunpack.i.h.bf16 %v13
  $region1: #{a_call__.2} parent=0
    #allocation7 [shape = 'u8[32768]{0}', space=vmem, size = 0x8000, scoped, tag = 'input window, operand 1, single buffered']
    #allocation8 [shape = 's32[1]{0}', space=sflag, size = 0x4, scoped, tag = 'scoped memory for a_call__.2']
    #allocation9 [shape = 'u8[32768]{0}', space=vmem, size = 0x8000, scoped, tag = 'input window, operand 3, single buffered']
    #allocation10 [shape = 's32[1]{0}', space=sflag, size = 0x4, scoped, tag = 'scoped memory for a_call__.2']
    #allocation11 [shape = 'u8[32768]{0}', space=vmem, size = 0x8000, scoped, tag = 'input window, operand 5, single buffered']
    #allocation12 [shape = 'u8[4096]{0}', space=vmem, size = 0x1000, dematerialized = true, scoped, tag = 'FusionAdapter Buffer %fusion.1 = bf16[16,128]{1,0:T(8,128)(2,1)} fusion(%param_6.1, %param_7), kind=kLoop, calls=%fused_computation.1.clone, metadata={op_name="jit(__call__)/scatter" stack_frame_id=8}']
    %18 = vsyncpa [#allocation8], 0
    %19 = vsyncpa [#allocation10], 0
    // Predicated region
    $region2: #{a_call__.2} parent=1 // pred_check
      _
    $region3: #{a_call__.2} parent=1 // pred_check_branch
      %21 = sbr.rel (0) target = $region5
    $region4: #{a_call__.2} parent=1 // pred_region
      _
    $region5: #{a_call__.2} parent=1 // pred_fallthru
      _
    // Predicated region
    $region6: #{a_call__.2} parent=1 // pred_check
      _
    $region7: #{a_call__.2} parent=1 // pred_check_branch
      %23 = sbr.rel (0) target = $region9
    $region8: #{a_call__.2} parent=1 // pred_region
      %s25 = ssub.s32 1024, 1024
      %26 = vsyncadd [#allocation8], %s25
      %s27 = sshll.u32 [#allocation7], 4
      %s28 = int_to_ptr.vmem [resolvable:$true] %s27
      %33 = dma.hbm_to_vmem [thread:$0]  %s0, 1024, %s28, [#allocation8], 128, 128, 8
    $region9: #{a_call__.2} parent=1 // pred_fallthru
      _
    // Predicated region
    $region10: #{a_call__.2} parent=1 // pred_check
      _
    $region11: #{a_call__.2} parent=1 // pred_check_branch
      %35 = sbr.rel (0) target = $region13
    $region12: #{a_call__.2} parent=1 // pred_region
      _
    $region13: #{a_call__.2} parent=1 // pred_fallthru
      _
    // Predicated region
    $region14: #{a_call__.2} parent=1 // pred_check
      _
    $region15: #{a_call__.2} parent=1 // pred_check_branch
      %37 = sbr.rel (0) target = $region17
    $region16: #{a_call__.2} parent=1 // pred_region
      %s39 = ssub.s32 1024, 1024
      %40 = vsyncadd [#allocation10], %s39
      %s41 = sshll.u32 [#allocation9], 4
      %s42 = int_to_ptr.vmem [resolvable:$true] %s41
      %47 = dma.hbm_to_vmem [thread:$0]  %s2, 1024, %s42, [#allocation10], 128, 128, 8
    $region17: #{a_call__.2} parent=1 // pred_fallthru
      _
    // Predicated region
    $region18: #{a_call__.2} parent=1 // pred_check
      _
    $region19: #{a_call__.2} parent=1 // pred_check_branch
      %49 = sbr.rel (0) target = $region21
    $region20: #{a_call__.2} parent=1 // pred_region
      _
    $region21: #{a_call__.2} parent=1 // pred_fallthru
      _
    // Predicated region
    $region22: #{a_call__.2} parent=1 // pred_check
      _
    $region23: #{a_call__.2} parent=1 // pred_check_branch
      %51 = sbr.rel (0) target = $region25
    $region24: #{a_call__.2} parent=1 // pred_region
      %s53 = ssub.s32 1024, 1024
      %54 = vsyncadd [#allocation10], %s53
      %s55 = sshll.u32 [#allocation11], 4
      %s56 = int_to_ptr.vmem [resolvable:$true] %s55
      %61 = dma.hbm_to_vmem [thread:$0]  %s4, 1024, %s56, [#allocation10], 128, 128, 8
    $region25: #{a_call__.2} parent=1 // pred_fallthru
      _
    // Predicated region
    $region26: #{a_call__.2} parent=1 // pred_check
      _
    $region27: #{a_call__.2} parent=1 // pred_check_branch
      %63 = sbr.rel (0) target = $region29
    $region28: #{a_call__.2} parent=1 // pred_region
      _
    $region29: #{a_call__.2} parent=1 // pred_fallthru
      _
    // Predicated region
    $region30: #{a_call__.2} parent=1 // pred_check
      _
    $region31: #{a_call__.2} parent=1 // pred_check_branch
      %65 = sbr.rel (0) target = $region33
    $region32: #{a_call__.2} parent=1 // pred_region
      %66 = dma.done [#allocation8], 1024
    $region33: #{a_call__.2} parent=1 // pred_fallthru
      _
    // Predicated region
    $region34: #{a_call__.2} parent=1 // pred_check
      _
    $region35: #{a_call__.2} parent=1 // pred_check_branch
      %68 = sbr.rel (0) target = $region37
    $region36: #{a_call__.2} parent=1 // pred_region
      %69 = dma.done [#allocation10], 1024
    $region37: #{a_call__.2} parent=1 // pred_fallthru
      _
    // Predicated region
    $region38: #{a_call__.2} parent=1 // pred_check
      _
    $region39: #{a_call__.2} parent=1 // pred_check_branch
      %71 = sbr.rel (0) target = $region41
    $region40: #{a_call__.2} parent=1 // pred_region
      %72 = dma.done [#allocation10], 1024
    $region41: #{a_call__.2} parent=1 // pred_fallthru
      _
    %s74 = sor.u32 3, 1
    %s75 = sand.u32 %s74, 1
    %v76 = vld [vmem:[%s6] sm:%s75]
    %v77 = vunpack.c.l.bf16 %v76
    %v78 = vunpack.c.h.bf16 %v76
    %v79 = vlaneseq
    %v80 = vshrl.u32 %v79, 7
    %vm82 = vcmp.lt.s32.totalorder %v80, 2
    %v83 = vsel %vm82, %v77, %v14
    %v84 = vlaneseq
    %v85 = vand.u32 %v84, 127
    %vm87 = vcmp.lt.s32.totalorder %v85, 16
    %v88 = vsel %vm87, %v83, %v14
    %v89 = vpack.c.bf16 0.0, %v88
    %91 = vst [vmem:[#allocation12] sm:$0xf] %v89
    %s92 = scalar_lea.vmem [#allocation12], 4
    %v93 = vpack.c.bf16 0.0, %v14
    %95 = vst [vmem:[%s92] sm:$0xf] %v93
    %v97 = vld [vmem:[#allocation12] sm:$0xf]
    %v98 = vld [vmem:[#allocation12 + $0x4] sm:$0xf]
    %v99 = vld [vmem:[#allocation7] sm:$0xff]
    %v100 = vld [vmem:[#allocation7 + $0x8] sm:$0xff]
    %v101 = vld [vmem:[#allocation7 + $0x10] sm:$0xff]
    %v102 = vld [vmem:[#allocation7 + $0x18] sm:$0xff]
    %v103 = vld [vmem:[#allocation7 + $0x20] sm:$0xff]
    %v104 = vld [vmem:[#allocation7 + $0x28] sm:$0xff]
    %v105 = vld [vmem:[#allocation7 + $0x30] sm:$0xff]
    %v106 = vld [vmem:[#allocation7 + $0x38] sm:$0xff]
    %v107 = vld [vmem:[%s1] sm:$0x1]
    %v109 = vlaneseq
    %v110 = vshrl.u32 %v109, 7
    %v111 = vsub.s32 0, %v110
    %v112 = vrot.slane %v107, %v111
    %v116 = vunpack.c.l.b16 %v97
    %v117 = vunpack.c.l.b16 %v98
    %v118 = vpack.c.b16 %v117, %v116
    %120 = vmatprep.subr.bf16.mxu0 0
    %121 = vmatpush1.bf16.msra.mxu0 %v99
    %122 = vmatprep.subr.bf16.mxu0 0
    %123 = vmatpush1.bf16.msra.mxu0 %v100
    %124 = vmatprep.subr.bf16.mxu0 0
    %125 = vmatpush1.bf16.msra.mxu0 %v101
    %126 = vmatprep.subr.bf16.mxu0 0
    %127 = vmatpush1.bf16.msra.mxu0 %v102
    %128 = vmatprep.subr.bf16.mxu0 0
    %129 = vmatpush1.bf16.msra.mxu0 %v103
    %130 = vmatprep.subr.bf16.mxu0 0
    %131 = vmatpush1.bf16.msra.mxu0 %v104
    %132 = vmatprep.subr.bf16.mxu0 0
    %133 = vmatpush1.bf16.msra.mxu0 %v105
    %134 = vmatprep.subr.bf16.mxu0 0
    %135 = vmatpush1.bf16.msra.mxu0 %v106
    %136 = vmatprep.subr.bf16.mxu0 0
    %137 = vmatpush1.bf16.msra.mxu0 0
    %138 = vmatprep.subr.bf16.mxu0 0
    %139 = vmatpush1.bf16.msra.mxu0 0
    %140 = vmatprep.subr.bf16.mxu0 0
    %141 = vmatpush1.bf16.msra.mxu0 0
    %142 = vmatprep.subr.bf16.mxu0 0
    %143 = vmatpush1.bf16.msra.mxu0 0
    %144 = vmatprep.subr.bf16.mxu0 0
    %145 = vmatpush1.bf16.msra.mxu0 0
    %146 = vmatprep.subr.bf16.mxu0 0
    %147 = vmatpush1.bf16.msra.mxu0 0
    %148 = vmatprep.subr.bf16.mxu0 0
    %149 = vmatpush1.bf16.msra.mxu0 0
    %150 = vmatprep.subr.bf16.mxu0 0
    %151 = vmatpush1.bf16.msra.mxu0 0
    %152 = vmatprep.mubr.bf16.mxu0 0
    %153 = vmatmul.mubr.bf16.gmra.mrb[0].mxu0 %v118
    %v154 = vpop.f32.mrb[0].mxu0
    %v155 = vadd.f32 %v112, %v154
    %v156 = vpop.f32.mrb[0].mxu0
    %v157 = vpop.f32.mrb[0].mxu0
    %v158 = vadd.f32 %v112, %v157
    %v159 = vpop.f32.mrb[0].mxu0
    %160 = vdwg.mxu0
    %v161 = vmax.f32 %v155, 0.0
    %v162 = vmax.f32 %v158, 0.0
    %v163 = vpack.c.bf16 %v162, %v161
    %v164 = vld [vmem:[#allocation9] sm:$0xff]
    %v165 = vld [vmem:[#allocation9 + $0x8] sm:$0xff]
    %v166 = vld [vmem:[#allocation9 + $0x10] sm:$0xff]
    %v167 = vld [vmem:[#allocation9 + $0x18] sm:$0xff]
    %v168 = vld [vmem:[#allocation9 + $0x20] sm:$0xff]
    %v169 = vld [vmem:[#allocation9 + $0x28] sm:$0xff]
    %v170 = vld [vmem:[#allocation9 + $0x30] sm:$0xff]
    %v171 = vld [vmem:[#allocation9 + $0x38] sm:$0xff]
    %v172 = vld [vmem:[%s3] sm:$0x1]
    %v174 = vlaneseq
    %v175 = vshrl.u32 %v174, 7
    %v176 = vsub.s32 0, %v175
    %v177 = vrot.slane %v172, %v176
    %179 = vmatprep.subr.bf16.mxu0 0
    %180 = vmatpush1.bf16.msra.mxu0 %v164
    %181 = vmatprep.subr.bf16.mxu0 0
    %182 = vmatpush1.bf16.msra.mxu0 %v165
    %183 = vmatprep.subr.bf16.mxu0 0
    %184 = vmatpush1.bf16.msra.mxu0 %v166
    %185 = vmatprep.subr.bf16.mxu0 0
    %186 = vmatpush1.bf16.msra.mxu0 %v167
    %187 = vmatprep.subr.bf16.mxu0 0
    %188 = vmatpush1.bf16.msra.mxu0 %v168
    %189 = vmatprep.subr.bf16.mxu0 0
    %190 = vmatpush1.bf16.msra.mxu0 %v169
    %191 = vmatprep.subr.bf16.mxu0 0
    %192 = vmatpush1.bf16.msra.mxu0 %v170
    %193 = vmatprep.subr.bf16.mxu0 0
    %194 = vmatpush1.bf16.msra.mxu0 %v171
    %195 = vmatprep.subr.bf16.mxu0 0
    %196 = vmatpush1.bf16.msra.mxu0 0
    %197 = vmatprep.subr.bf16.mxu0 0
    %198 = vmatpush1.bf16.msra.mxu0 0
    %199 = vmatprep.subr.bf16.mxu0 0
    %200 = vmatpush1.bf16.msra.mxu0 0
    %201 = vmatprep.subr.bf16.mxu0 0
    %202 = vmatpush1.bf16.msra.mxu0 0
    %203 = vmatprep.subr.bf16.mxu0 0
    %204 = vmatpush1.bf16.msra.mxu0 0
    %205 = vmatprep.subr.bf16.mxu0 0
    %206 = vmatpush1.bf16.msra.mxu0 0
    %207 = vmatprep.subr.bf16.mxu0 0
    %208 = vmatpush1.bf16.msra.mxu0 0
    %209 = vmatprep.subr.bf16.mxu0 0
    %210 = vmatpush1.bf16.msra.mxu0 0
    %211 = vmatprep.mubr.bf16.mxu0 0
    %212 = vmatmul.mubr.bf16.gmra.mrb[0].mxu0 %v163
    %v213 = vpop.f32.mrb[0].mxu0
    %v214 = vadd.f32 %v177, %v213
    %v215 = vpop.f32.mrb[0].mxu0
    %v216 = vpop.f32.mrb[0].mxu0
    %v217 = vadd.f32 %v177, %v216
    %v218 = vpop.f32.mrb[0].mxu0
    %219 = vdwg.mxu0
    %v220 = vmax.f32 %v214, 0.0
    %v221 = vmax.f32 %v217, 0.0
    %v222 = vpack.c.bf16 %v221, %v220
    %v223 = vld [vmem:[#allocation11] sm:$0xff]
    %v224 = vld [vmem:[#allocation11 + $0x8] sm:$0xff]
    %v225 = vld [vmem:[#allocation11 + $0x10] sm:$0xff]
    %v226 = vld [vmem:[#allocation11 + $0x18] sm:$0xff]
    %v227 = vld [vmem:[#allocation11 + $0x20] sm:$0xff]
    %v228 = vld [vmem:[#allocation11 + $0x28] sm:$0xff]
    %v229 = vld [vmem:[#allocation11 + $0x30] sm:$0xff]
    %v230 = vld [vmem:[#allocation11 + $0x38] sm:$0xff]
    %v231 = vld [vmem:[%s5] sm:$0x1]
    %v233 = vlaneseq
    %v234 = vshrl.u32 %v233, 7
    %v235 = vsub.s32 0, %v234
    %v236 = vrot.slane %v231, %v235
    %238 = vmatprep.subr.bf16.mxu0 0
    %239 = vmatpush1.bf16.msra.mxu0 %v223
    %240 = vmatprep.subr.bf16.mxu0 0
    %241 = vmatpush1.bf16.msra.mxu0 %v224
    %242 = vmatprep.subr.bf16.mxu0 0
    %243 = vmatpush1.bf16.msra.mxu0 %v225
    %244 = vmatprep.subr.bf16.mxu0 0
    %245 = vmatpush1.bf16.msra.mxu0 %v226
    %246 = vmatprep.subr.bf16.mxu0 0
    %247 = vmatpush1.bf16.msra.mxu0 %v227
    %248 = vmatprep.subr.bf16.mxu0 0
    %249 = vmatpush1.bf16.msra.mxu0 %v228
    %250 = vmatprep.subr.bf16.mxu0 0
    %251 = vmatpush1.bf16.msra.mxu0 %v229
    %252 = vmatprep.subr.bf16.mxu0 0
    %253 = vmatpush1.bf16.msra.mxu0 %v230
    %254 = vmatprep.subr.bf16.mxu0 0
    %255 = vmatpush1.bf16.msra.mxu0 0
    %256 = vmatprep.subr.bf16.mxu0 0
    %257 = vmatpush1.bf16.msra.mxu0 0
    %258 = vmatprep.subr.bf16.mxu0 0
    %259 = vmatpush1.bf16.msra.mxu0 0
    %260 = vmatprep.subr.bf16.mxu0 0
    %261 = vmatpush1.bf16.msra.mxu0 0
    %262 = vmatprep.subr.bf16.mxu0 0
    %263 = vmatpush1.bf16.msra.mxu0 0
    %264 = vmatprep.subr.bf16.mxu0 0
    %265 = vmatpush1.bf16.msra.mxu0 0
    %266 = vmatprep.subr.bf16.mxu0 0
    %267 = vmatpush1.bf16.msra.mxu0 0
    %268 = vmatprep.subr.bf16.mxu0 0
    %269 = vmatpush1.bf16.msra.mxu0 0
    %270 = vmatprep.mubr.bf16.mxu0 0
    %271 = vmatmul.mubr.bf16.gmra.mrb[0].mxu0 %v222
    %v272 = vpop.f32.mrb[0].mxu0
    %v273 = vadd.f32 %v236, %v272
    %v274 = vpop.f32.mrb[0].mxu0
    %v275 = vpop.f32.mrb[0].mxu0
    %v276 = vadd.f32 %v236, %v275
    %v277 = vpop.f32.mrb[0].mxu0
    %278 = vdwg.mxu0
    %279 = vst [vmem:[%s8] sm:$0xff] %v273
    %280 = vst [vmem:[%s8 + $0x8] sm:$0xff] %v276
    // Predicated region
    $region42: #{a_call__.2} parent=1 // pred_check
      _
    $region43: #{a_call__.2} parent=1 // pred_check_branch
      %282 = sbr.rel (0) target = $region45
    $region44: #{a_call__.2} parent=1 // pred_region
      _
    $region45: #{a_call__.2} parent=1 // pred_fallthru
      _
    // Predicated region
    $region46: #{a_call__.2} parent=1 // pred_check
      _
    $region47: #{a_call__.2} parent=1 // pred_check_branch
      %284 = sbr.rel (0) target = $region49
    $region48: #{a_call__.2} parent=1 // pred_region
      _
    $region49: #{a_call__.2} parent=1 // pred_fallthru
      _
    %285 = vsyncpa [#allocation8], 1
    %286 = vsyncpa [#allocation10], 1

</llo_original>
